<compile_context>
chip_gen: v7x
topology: tpu7x:2x2x1
jax: 0.10.0
libtpu: 0.0.40
codegen_flags: <defaults>
</compile_context>

<pallas_src>
import functools

import jax
import jax.numpy as jnp
import numpy as np
from jax import lax
from jax.experimental import pallas as pl
from jax.experimental.pallas import tpu as pltpu

_VMEM = pl.BlockSpec(memory_space=pltpu.MemorySpace.VMEM)
_MXU_DTYPE = jnp.bfloat16   # dot operands; accumulation stays f32
_BN_EPS = 1e-5


# ------------------------------ in-kernel building blocks ------------------------------
def _conv3_same(h, w_ref, b, first_mask, last_mask):
    """Conv1d(k=3, padding='same') over the flattened (batch*length) lane axis.

    h: (Ci, N*L2) f32; w_ref: (Co, 3*Ci) bf16 = [W_tap0 | W_tap1 | W_tap2] stacked along K;
    b: (Co, 1) f32.  first/last_mask: (1, N*L2) bool, True at l==0 / l==L2-1 of every batch
    element (implements the zero 'same' padding and stops taps crossing batch boundaries).
    """
    nlanes = h.shape[1]
    h_m1 = jnp.where(first_mask, 0.0, pltpu.roll(h, shift=1, axis=1))           # h[l-1]
    h_p1 = jnp.where(last_mask, 0.0, pltpu.roll(h, shift=nlanes - 1, axis=1))   # h[l+1]
    hs = jnp.concatenate([h_m1, h, h_p1], axis=0)                               # (3*Ci, N*L2)
    return jnp.dot(w_ref[...], hs.astype(_MXU_DTYPE),
                   preferred_element_type=jnp.float32) + b


def _bn_elu(h, gamma, beta):
    """Training-mode BatchNorm1d (per-channel stats over batch*length, biased var) + ELU."""
    mean = jnp.mean(h, axis=1, keepdims=True)
    var = jnp.mean(jnp.square(h - mean), axis=1, keepdims=True)
    hn = (h - mean) * lax.rsqrt(var + _BN_EPS) * gamma + beta
    # ELU(alpha=1); exp runs on the EUP slot (kept as exp-1, see header note).
    return jnp.where(hn > 0, hn, jnp.exp(jnp.minimum(hn, 0.0)) - 1.0)


# ------------------------------------ fused kernel ------------------------------------
def decoder_block_kernel(l2, xr_ref, y_ref, wt_ref, bt_ref,
                         w1_ref, b1_ref, g1_ref, be1_ref,
                         w2_ref, b2_ref, g2_ref, be2_ref, out_ref):
    co, nl2 = out_ref.shape

    # Lane-index masks, hoisted once and reused by both convs.
    idx = lax.broadcasted_iota(jnp.int32, (1, nl2), 1)
    pos = idx % l2                       # position inside each batch element
    first_mask = pos == 0
    last_mask = pos == l2 - 1
    odd_mask = (idx % 2) == 1            # lane parity == output tap of the transposed conv

    # ---- ConvTranspose1d(k=2, stride=2): one fat matmul + parity select ----
    # xr[:, j] = x[:, j // 2] (2x lane-repeat done at the call boundary), so tap0 / tap1 of the
    # row-stacked weight give even / odd output positions directly -- already interleaved.
    eo = jnp.dot(wt_ref[...], xr_ref[...],
                 preferred_element_type=jnp.float32)                  # (2*Co, N*L2)
    up = jnp.where(odd_mask, eo[co:, :], eo[:co, :]) + bt_ref[...]    # (Co,   N*L2)

    # ---- concat skip connection along channels (sublane axis) ----
    h = jnp.concatenate([up, y_ref[...]], axis=0)                     # (Co+Cskip, N*L2)

    # ---- ConvBlock: (Conv1d k=3 'same' -> BN -> ELU) x 2 ----
    a = _conv3_same(h, w1_ref, b1_ref[...], first_mask, last_mask)
    a = _bn_elu(a, g1_ref[...], be1_ref[...])
    a = _conv3_same(a, w2_ref, b2_ref[...], first_mask, last_mask)
    a = _bn_elu(a, g2_ref[...], be2_ref[...])
    out_ref[...] = a.astype(out_ref.dtype)


# -------------------------------------- wrapper --------------------------------------
@jax.jit
def decoder_block(x, y, params):
    """DecoderBlock forward. x: (N, Cin, L), y: (N, Cskip, 2L) -> (N, Cout, 2L), NCL layout,
    parameters in PyTorch layouts (see __main__)."""
    n, cin, l = x.shape
    _, cskip, l2 = y.shape
    assert l2 == 2 * l, (l2, l)
    cout = params["conv_t_w"].shape[1]
    cmid = cout + cskip
    nl2 = n * l2
    f32 = jnp.float32

    # channels -> sublanes, flattened (batch, length) -> lanes; the transposed-conv input is
    # additionally repeated 2x along lanes (nearest-neighbour) so the kernel can emit the
    # interleaved upsampled signal with a single full-length matmul + parity select.
    x2 = jnp.transpose(x, (1, 0, 2)).reshape(cin, n * l)
    xr = jnp.repeat(x2.astype(_MXU_DTYPE), 2, axis=1)                 # (Cin,   N*2L) bf16
    y2 = jnp.transpose(y, (1, 0, 2)).reshape(cskip, nl2)              # (Cskip, N*2L) f32

    col = lambda v: v.reshape(-1, 1).astype(f32)                      # (C,) -> (C, 1)
    # ConvTranspose1d weight (Cin, Cout, 2) -> (2*Cout, Cin) = [tap0 ; tap1]  (bf16 MXU operand)
    wt = params["conv_t_w"]
    wt_stk = jnp.concatenate([wt[:, :, 0].T, wt[:, :, 1].T], axis=0).astype(_MXU_DTYPE)
    # Conv1d weights (Co, Ci, 3) -> (Co, 3*Ci) = [W_tap0 | W_tap1 | W_tap2]
    stack_k3 = lambda w: jnp.concatenate(
        [w[:, :, 0], w[:, :, 1], w[:, :, 2]], axis=1).astype(_MXU_DTYPE)
    w1_stk, w2_stk = stack_k3(params["conv1_w"]), stack_k3(params["conv2_w"])

    cost = pl.CostEstimate(
        flops=2 * nl2 * (2 * cout * cin + 3 * cout * cmid + 3 * cout * cout),
        transcendentals=2 * cout * nl2,
        bytes_accessed=nl2 * (2 * cin + 4 * cskip + 4 * cout)
        + 2 * (wt_stk.size + w1_stk.size + w2_stk.size),
    )

    out2 = pl.pallas_call(
        functools.partial(decoder_block_kernel, l2),
        out_shape=jax.ShapeDtypeStruct((cout, nl2), f32),
        in_specs=[_VMEM] * 12,
        out_specs=_VMEM,
        cost_estimate=cost,
        compiler_params=pltpu.CompilerParams(vmem_limit_bytes=32 * 1024 * 1024),
    )(xr, y2,
      wt_stk, col(params["conv_t_b"]),
      w1_stk, col(params["conv1_b"]), col(params["bn1_g"]), col(params["bn1_b"]),
      w2_stk, col(params["conv2_b"]), col(params["bn2_g"]), col(params["bn2_b"]))

    return jnp.transpose(out2.reshape(cout, n, l2), (1, 0, 2))        # back to (N, Cout, 2L)


# ----------------------- pure-JAX f32 reference for the self-check -----------------------
def _reference_forward(x, y, p):
    hi = lax.Precision.HIGHEST
    n, _, l = x.shape
    cout = p["conv_t_w"].shape[1]
    up = jnp.einsum("ncl,cot->nolt", x, p["conv_t_w"], precision=hi).reshape(n, cout, 2 * l)
    up = up + p["conv_t_b"][None, :, None]
    h = jnp.concatenate([up, y], axis=1)

    def conv3(h, w, b):
        hp = jnp.pad(h, ((0, 0), (0, 0), (1, 1)))
        out = (jnp.einsum("oc,ncl->nol", w[:, :, 0], hp[:, :, :-2], precision=hi)
               + jnp.einsum("oc,ncl->nol", w[:, :, 1], hp[:, :, 1:-1], precision=hi)
               + jnp.einsum("oc,ncl->nol", w[:, :, 2], hp[:, :, 2:], precision=hi))
        return out + b[None, :, None]

    def bn_elu(h, g, b):
        m = jnp.mean(h, axis=(0, 2), keepdims=True)
        v = jnp.mean(jnp.square(h - m), axis=(0, 2), keepdims=True)
        hn = (h - m) / jnp.sqrt(v + _BN_EPS) * g[None, :, None] + b[None, :, None]
        return jnp.where(hn > 0, hn, jnp.exp(jnp.minimum(hn, 0.0)) - 1.0)

    a = bn_elu(conv3(h, p["conv1_w"], p["conv1_b"]), p["bn1_g"], p["bn1_b"])
    return bn_elu(conv3(a, p["conv2_w"], p["conv2_b"]), p["bn2_g"], p["bn2_b"])


if __name__ == "__main__":
    # Small but lane/sublane-friendly shapes (f32: 8-sublane x 128-lane tiles):
    # N*L = 128 and N*2L = 256 lanes, channel counts multiples of 8.
    N, Cin, Cout, Cskip, L = 2, 16, 8, 8, 64
    key = jax.random.PRNGKey(0)
    ks = jax.random.split(key, 12)

    x = jax.random.normal(ks[0], (N, Cin, L), jnp.float32)            # PyTorch NCL input
    y = jax.random.normal(ks[1], (N, Cskip, 2 * L), jnp.float32)      # skip connection

    params = dict(  # PyTorch parameter layouts
        conv_t_w=0.2 * jax.random.normal(ks[2], (Cin, Cout, 2), jnp.float32),
        conv_t_b=0.1 * jax.random.normal(ks[3], (Cout,), jnp.float32),
        conv1_w=0.2 * jax.random.normal(ks[4], (Cout, Cout + Cskip, 3), jnp.float32),
        conv1_b=0.1 * jax.random.normal(ks[5], (Cout,), jnp.float32),
        bn1_g=1.0 + 0.1 * jax.random.normal(ks[6], (Cout,), jnp.float32),
        bn1_b=0.1 * jax.random.normal(ks[7], (Cout,), jnp.float32),
        conv2_w=0.2 * jax.random.normal(ks[8], (Cout, Cout, 3), jnp.float32),
        conv2_b=0.1 * jax.random.normal(ks[9], (Cout,), jnp.float32),
        bn2_g=1.0 + 0.1 * jax.random.normal(ks[10], (Cout,), jnp.float32),
        bn2_b=0.1 * jax.random.normal(ks[11], (Cout,), jnp.float32),
    )

    out = jax.block_until_ready(decoder_block(x, y, params))
    assert out.shape == (N, Cout, 2 * L), out.shape
    assert bool(jnp.all(jnp.isfinite(out)))

    # correctness self-check (bf16 MXU operands in the kernel -> loose tolerance)
    ref = jax.block_until_ready(_reference_forward(x, y, params))
    np.testing.assert_allclose(np.asarray(out), np.asarray(ref), rtol=0.1, atol=0.1)

    # TODO(synk): self.max_pool is defined in __init__ but unused in forward -- not implemented.
    # TODO(synk): BatchNorm running_mean/running_var buffers are not updated (output matches).
    print("KERNEL_OK")
</pallas_src>

<mosaic_0001>
module attributes {stable_mosaic.version = 11 : i64} {
  func.func @decoder_block_kernel(%arg0: memref<16x256xbf16, #tpu.memory_space<vmem>>, %arg1: memref<8x256xf32, #tpu.memory_space<vmem>>, %arg2: memref<16x16xbf16, #tpu.memory_space<vmem>>, %arg3: memref<8x1xf32, #tpu.memory_space<vmem>>, %arg4: memref<8x48xbf16, #tpu.memory_space<vmem>>, %arg5: memref<8x1xf32, #tpu.memory_space<vmem>>, %arg6: memref<8x1xf32, #tpu.memory_space<vmem>>, %arg7: memref<8x1xf32, #tpu.memory_space<vmem>>, %arg8: memref<8x24xbf16, #tpu.memory_space<vmem>>, %arg9: memref<8x1xf32, #tpu.memory_space<vmem>>, %arg10: memref<8x1xf32, #tpu.memory_space<vmem>>, %arg11: memref<8x1xf32, #tpu.memory_space<vmem>>, %arg12: memref<8x256xf32, #tpu.memory_space<vmem>>) attributes {dimension_semantics = [], scalar_prefetch = 0 : i64, scratch_operands = 0 : i64, tpu.core_type = #tpu.core_type<tc>} {
    %0 = tpu.iota {dimensions = array<i32: 1>} : vector<1x256xi32>
    %c128_i32 = arith.constant 128 : i32
    %c0_i32 = arith.constant 0 : i32
    %1 = arith.cmpi eq, %c128_i32, %c0_i32 : i32
    %c1_i32 = arith.constant 1 : i32
    %2 = arith.select %1, %c1_i32, %c128_i32 : i32
    %3 = vector.broadcast %2 : i32 to vector<1x256xi32>
    %4 = arith.remsi %0, %3 : vector<1x256xi32>
    %c0_i32_0 = arith.constant 0 : i32
    %5 = vector.broadcast %c0_i32_0 : i32 to vector<1x256xi32>
    %6 = arith.cmpi ne, %4, %5 : vector<1x256xi32>
    %c0_i32_1 = arith.constant 0 : i32
    %7 = vector.broadcast %c0_i32_1 : i32 to vector<1x256xi32>
    %8 = arith.cmpi slt, %4, %7 : vector<1x256xi32>
    %c0_i32_2 = arith.constant 0 : i32
    %9 = arith.cmpi slt, %2, %c0_i32_2 : i32
    %10 = vector.broadcast %9 : i1 to vector<1x256xi1>
    %11 = vector.broadcast %10 : vector<1x256xi1> to vector<1x256xi1>
    %12 = arith.xori %8, %11 : vector<1x256xi1>
    %13 = arith.andi %12, %6 : vector<1x256xi1>
    %14 = vector.broadcast %2 : i32 to vector<1x256xi32>
    %15 = arith.addi %4, %14 : vector<1x256xi32>
    %16 = arith.select %13, %15, %4 : vector<1x256xi1>, vector<1x256xi32>
    %c0_i32_3 = arith.constant 0 : i32
    %17 = vector.broadcast %c0_i32_3 : i32 to vector<1x256xi32>
    %18 = arith.cmpi eq, %16, %17 : vector<1x256xi32>
    %c127_i32 = arith.constant 127 : i32
    %19 = vector.broadcast %c127_i32 : i32 to vector<1x256xi32>
    %20 = arith.cmpi eq, %16, %19 : vector<1x256xi32>
    %c2_i32 = arith.constant 2 : i32
    %c0_i32_4 = arith.constant 0 : i32
    %21 = arith.cmpi eq, %c2_i32, %c0_i32_4 : i32
    %c1_i32_5 = arith.constant 1 : i32
    %22 = arith.select %21, %c1_i32_5, %c2_i32 : i32
    %23 = vector.broadcast %22 : i32 to vector<1x256xi32>
    %24 = arith.remsi %0, %23 : vector<1x256xi32>
    %c0_i32_6 = arith.constant 0 : i32
    %25 = vector.broadcast %c0_i32_6 : i32 to vector<1x256xi32>
    %26 = arith.cmpi ne, %24, %25 : vector<1x256xi32>
    %c0_i32_7 = arith.constant 0 : i32
    %27 = vector.broadcast %c0_i32_7 : i32 to vector<1x256xi32>
    %28 = arith.cmpi slt, %24, %27 : vector<1x256xi32>
    %c0_i32_8 = arith.constant 0 : i32
    %29 = arith.cmpi slt, %22, %c0_i32_8 : i32
    %30 = vector.broadcast %29 : i1 to vector<1x256xi1>
    %31 = vector.broadcast %30 : vector<1x256xi1> to vector<1x256xi1>
    %32 = arith.xori %28, %31 : vector<1x256xi1>
    %33 = arith.andi %32, %26 : vector<1x256xi1>
    %34 = vector.broadcast %22 : i32 to vector<1x256xi32>
    %35 = arith.addi %24, %34 : vector<1x256xi32>
    %36 = arith.select %33, %35, %24 : vector<1x256xi1>, vector<1x256xi32>
    %c1_i32_9 = arith.constant 1 : i32
    %37 = vector.broadcast %c1_i32_9 : i32 to vector<1x256xi32>
    %38 = arith.cmpi eq, %36, %37 : vector<1x256xi32>
    %c0 = arith.constant 0 : index
    %c0_10 = arith.constant 0 : index
    %39 = vector.load %arg2[%c0, %c0_10] : memref<16x16xbf16, #tpu.memory_space<vmem>>, vector<16x16xbf16>
    %c0_11 = arith.constant 0 : index
    %c0_12 = arith.constant 0 : index
    %40 = vector.load %arg0[%c0_11, %c0_12] : memref<16x256xbf16, #tpu.memory_space<vmem>>, vector<16x256xbf16>
    %cst = arith.constant dense<0.000000e+00> : vector<16x256xf32>
    %41 = tpu.matmul %39, %40, %cst {dimension_numbers = #tpu.dot_dimension_numbers<[1], [0], [0], [1], [0, 0, 1, 1], [], []>} : vector<16x16xbf16>, vector<16x256xbf16>, vector<16x256xf32> -> vector<16x256xf32>
    %42 = vector.extract_strided_slice %41 {offsets = [8, 0], sizes = [8, 256], strides = [1, 1]} : vector<16x256xf32> to vector<8x256xf32>
    %43 = vector.extract_strided_slice %41 {offsets = [0, 0], sizes = [8, 256], strides = [1, 1]} : vector<16x256xf32> to vector<8x256xf32>
    %44 = vector.shape_cast %38 : vector<1x256xi1> to vector<1x256xi1>
    %45 = vector.broadcast %44 : vector<1x256xi1> to vector<8x256xi1>
    %46 = arith.select %45, %42, %43 : vector<8x256xi1>, vector<8x256xf32>
    %c0_13 = arith.constant 0 : index
    %c0_14 = arith.constant 0 : index
    %47 = vector.load %arg3[%c0_13, %c0_14] : memref<8x1xf32, #tpu.memory_space<vmem>>, vector<8x1xf32>
    %48 = vector.broadcast %47 : vector<8x1xf32> to vector<8x256xf32>
    %49 = arith.addf %46, %48 : vector<8x256xf32>
    %c0_15 = arith.constant 0 : index
    %c0_16 = arith.constant 0 : index
    %50 = vector.load %arg1[%c0_15, %c0_16] : memref<8x256xf32, #tpu.memory_space<vmem>>, vector<8x256xf32>
    %51 = tpu.concatenate %49, %50 in 0 : vector<8x256xf32>, vector<8x256xf32> -> vector<16x256xf32>
    %c0_17 = arith.constant 0 : index
    %c0_18 = arith.constant 0 : index
    %52 = vector.load %arg5[%c0_17, %c0_18] : memref<8x1xf32, #tpu.memory_space<vmem>>, vector<8x1xf32>
    %c1_i32_19 = arith.constant 1 : i32
    %53 = tpu.dynamic_rotate %51 by %c1_i32_19 dim 1 : vector<16x256xf32>, i32 -> vector<16x256xf32>
    %cst_20 = arith.constant 0.000000e+00 : f32
    %54 = vector.shape_cast %18 : vector<1x256xi1> to vector<1x256xi1>
    %55 = vector.broadcast %54 : vector<1x256xi1> to vector<16x256xi1>
    %56 = vector.broadcast %cst_20 : f32 to vector<16x256xf32>
    %57 = arith.select %55, %56, %53 : vector<16x256xi1>, vector<16x256xf32>
    %c255_i32 = arith.constant 255 : i32
    %58 = tpu.dynamic_rotate %51 by %c255_i32 dim 1 : vector<16x256xf32>, i32 -> vector<16x256xf32>
    %cst_21 = arith.constant 0.000000e+00 : f32
    %59 = vector.shape_cast %20 : vector<1x256xi1> to vector<1x256xi1>
    %60 = vector.broadcast %59 : vector<1x256xi1> to vector<16x256xi1>
    %61 = vector.broadcast %cst_21 : f32 to vector<16x256xf32>
    %62 = arith.select %60, %61, %58 : vector<16x256xi1>, vector<16x256xf32>
    %63 = tpu.concatenate %57, %51, %62 in 0 : vector<16x256xf32>, vector<16x256xf32>, vector<16x256xf32> -> vector<48x256xf32>
    %c0_22 = arith.constant 0 : index
    %c0_23 = arith.constant 0 : index
    %64 = vector.load %arg4[%c0_22, %c0_23] : memref<8x48xbf16, #tpu.memory_space<vmem>>, vector<8x48xbf16>
    %65 = arith.truncf %63 : vector<48x256xf32> to vector<48x256xbf16>
    %cst_24 = arith.constant dense<0.000000e+00> : vector<8x256xf32>
    %66 = tpu.matmul %64, %65, %cst_24 {dimension_numbers = #tpu.dot_dimension_numbers<[1], [0], [0], [1], [0, 0, 1, 1], [], []>} : vector<8x48xbf16>, vector<48x256xbf16>, vector<8x256xf32> -> vector<8x256xf32>
    %67 = vector.broadcast %52 : vector<8x1xf32> to vector<8x256xf32>
    %68 = arith.addf %66, %67 : vector<8x256xf32>
    %c0_25 = arith.constant 0 : index
    %c0_26 = arith.constant 0 : index
    %69 = vector.load %arg6[%c0_25, %c0_26] : memref<8x1xf32, #tpu.memory_space<vmem>>, vector<8x1xf32>
    %c0_27 = arith.constant 0 : index
    %c0_28 = arith.constant 0 : index
    %70 = vector.load %arg7[%c0_27, %c0_28] : memref<8x1xf32, #tpu.memory_space<vmem>>, vector<8x1xf32>
    %cst_29 = arith.constant dense<0.000000e+00> : vector<8xf32>
    %71 = vector.multi_reduction <add>, %68, %cst_29 [1] : vector<8x256xf32> to vector<8xf32>
    %72 = vector.shape_cast %71 : vector<8xf32> to vector<8x1xf32>
    %cst_30 = arith.constant 2.560000e+02 : f32
    %73 = vector.broadcast %cst_30 : f32 to vector<8x1xf32>
    %74 = arith.divf %72, %73 : vector<8x1xf32>
    %75 = vector.broadcast %74 : vector<8x1xf32> to vector<8x256xf32>
    %76 = arith.subf %68, %75 : vector<8x256xf32>
    %77 = arith.mulf %76, %76 : vector<8x256xf32>
    %cst_31 = arith.constant dense<0.000000e+00> : vector<8xf32>
    %78 = vector.multi_reduction <add>, %77, %cst_31 [1] : vector<8x256xf32> to vector<8xf32>
    %79 = vector.shape_cast %78 : vector<8xf32> to vector<8x1xf32>
    %cst_32 = arith.constant 2.560000e+02 : f32
    %80 = vector.broadcast %cst_32 : f32 to vector<8x1xf32>
    %81 = arith.divf %79, %80 : vector<8x1xf32>
    %82 = vector.broadcast %74 : vector<8x1xf32> to vector<8x256xf32>
    %83 = arith.subf %68, %82 : vector<8x256xf32>
    %cst_33 = arith.constant 9.99999974E-6 : f32
    %84 = vector.broadcast %cst_33 : f32 to vector<8x1xf32>
    %85 = arith.addf %81, %84 : vector<8x1xf32>
    %86 = math.rsqrt %85 : vector<8x1xf32>
    %87 = vector.broadcast %86 : vector<8x1xf32> to vector<8x256xf32>
    %88 = arith.mulf %83, %87 : vector<8x256xf32>
    %89 = vector.broadcast %69 : vector<8x1xf32> to vector<8x256xf32>
    %90 = arith.mulf %88, %89 : vector<8x256xf32>
    %91 = vector.broadcast %70 : vector<8x1xf32> to vector<8x256xf32>
    %92 = arith.addf %90, %91 : vector<8x256xf32>
    %cst_34 = arith.constant 0.000000e+00 : f32
    %93 = vector.broadcast %cst_34 : f32 to vector<8x256xf32>
    %94 = arith.cmpf ogt, %92, %93 : vector<8x256xf32>
    %cst_35 = arith.constant 0.000000e+00 : f32
    %95 = vector.broadcast %cst_35 : f32 to vector<8x256xf32>
    %96 = arith.minimumf %92, %95 : vector<8x256xf32>
    %97 = math.exp %96 : vector<8x256xf32>
    %cst_36 = arith.constant 1.000000e+00 : f32
    %98 = vector.broadcast %cst_36 : f32 to vector<8x256xf32>
    %99 = arith.subf %97, %98 : vector<8x256xf32>
    %100 = arith.select %94, %92, %99 : vector<8x256xi1>, vector<8x256xf32>
    %c0_37 = arith.constant 0 : index
    %c0_38 = arith.constant 0 : index
    %101 = vector.load %arg9[%c0_37, %c0_38] : memref<8x1xf32, #tpu.memory_space<vmem>>, vector<8x1xf32>
    %c1_i32_39 = arith.constant 1 : i32
    %102 = tpu.dynamic_rotate %100 by %c1_i32_39 dim 1 : vector<8x256xf32>, i32 -> vector<8x256xf32>
    %cst_40 = arith.constant 0.000000e+00 : f32
    %103 = vector.shape_cast %18 : vector<1x256xi1> to vector<1x256xi1>
    %104 = vector.broadcast %103 : vector<1x256xi1> to vector<8x256xi1>
    %105 = vector.broadcast %cst_40 : f32 to vector<8x256xf32>
    %106 = arith.select %104, %105, %102 : vector<8x256xi1>, vector<8x256xf32>
    %c255_i32_41 = arith.constant 255 : i32
    %107 = tpu.dynamic_rotate %100 by %c255_i32_41 dim 1 : vector<8x256xf32>, i32 -> vector<8x256xf32>
    %cst_42 = arith.constant 0.000000e+00 : f32
    %108 = vector.shape_cast %20 : vector<1x256xi1> to vector<1x256xi1>
    %109 = vector.broadcast %108 : vector<1x256xi1> to vector<8x256xi1>
    %110 = vector.broadcast %cst_42 : f32 to vector<8x256xf32>
    %111 = arith.select %109, %110, %107 : vector<8x256xi1>, vector<8x256xf32>
    %112 = tpu.concatenate %106, %100, %111 in 0 : vector<8x256xf32>, vector<8x256xf32>, vector<8x256xf32> -> vector<24x256xf32>
    %c0_43 = arith.constant 0 : index
    %c0_44 = arith.constant 0 : index
    %113 = vector.load %arg8[%c0_43, %c0_44] : memref<8x24xbf16, #tpu.memory_space<vmem>>, vector<8x24xbf16>
    %114 = arith.truncf %112 : vector<24x256xf32> to vector<24x256xbf16>
    %cst_45 = arith.constant dense<0.000000e+00> : vector<8x256xf32>
    %115 = tpu.matmul %113, %114, %cst_45 {dimension_numbers = #tpu.dot_dimension_numbers<[1], [0], [0], [1], [0, 0, 1, 1], [], []>} : vector<8x24xbf16>, vector<24x256xbf16>, vector<8x256xf32> -> vector<8x256xf32>
    %116 = vector.broadcast %101 : vector<8x1xf32> to vector<8x256xf32>
    %117 = arith.addf %115, %116 : vector<8x256xf32>
    %c0_46 = arith.constant 0 : index
    %c0_47 = arith.constant 0 : index
    %118 = vector.load %arg10[%c0_46, %c0_47] : memref<8x1xf32, #tpu.memory_space<vmem>>, vector<8x1xf32>
    %c0_48 = arith.constant 0 : index
    %c0_49 = arith.constant 0 : index
    %119 = vector.load %arg11[%c0_48, %c0_49] : memref<8x1xf32, #tpu.memory_space<vmem>>, vector<8x1xf32>
    %cst_50 = arith.constant dense<0.000000e+00> : vector<8xf32>
    %120 = vector.multi_reduction <add>, %117, %cst_50 [1] : vector<8x256xf32> to vector<8xf32>
    %121 = vector.shape_cast %120 : vector<8xf32> to vector<8x1xf32>
    %cst_51 = arith.constant 2.560000e+02 : f32
    %122 = vector.broadcast %cst_51 : f32 to vector<8x1xf32>
    %123 = arith.divf %121, %122 : vector<8x1xf32>
    %124 = vector.broadcast %123 : vector<8x1xf32> to vector<8x256xf32>
    %125 = arith.subf %117, %124 : vector<8x256xf32>
    %126 = arith.mulf %125, %125 : vector<8x256xf32>
    %cst_52 = arith.constant dense<0.000000e+00> : vector<8xf32>
    %127 = vector.multi_reduction <add>, %126, %cst_52 [1] : vector<8x256xf32> to vector<8xf32>
    %128 = vector.shape_cast %127 : vector<8xf32> to vector<8x1xf32>
    %cst_53 = arith.constant 2.560000e+02 : f32
    %129 = vector.broadcast %cst_53 : f32 to vector<8x1xf32>
    %130 = arith.divf %128, %129 : vector<8x1xf32>
    %131 = vector.broadcast %123 : vector<8x1xf32> to vector<8x256xf32>
    %132 = arith.subf %117, %131 : vector<8x256xf32>
    %cst_54 = arith.constant 9.99999974E-6 : f32
    %133 = vector.broadcast %cst_54 : f32 to vector<8x1xf32>
    %134 = arith.addf %130, %133 : vector<8x1xf32>
    %135 = math.rsqrt %134 : vector<8x1xf32>
    %136 = vector.broadcast %135 : vector<8x1xf32> to vector<8x256xf32>
    %137 = arith.mulf %132, %136 : vector<8x256xf32>
    %138 = vector.broadcast %118 : vector<8x1xf32> to vector<8x256xf32>
    %139 = arith.mulf %137, %138 : vector<8x256xf32>
    %140 = vector.broadcast %119 : vector<8x1xf32> to vector<8x256xf32>
    %141 = arith.addf %139, %140 : vector<8x256xf32>
    %cst_55 = arith.constant 0.000000e+00 : f32
    %142 = vector.broadcast %cst_55 : f32 to vector<8x256xf32>
    %143 = arith.cmpf ogt, %141, %142 : vector<8x256xf32>
    %cst_56 = arith.constant 0.000000e+00 : f32
    %144 = vector.broadcast %cst_56 : f32 to vector<8x256xf32>
    %145 = arith.minimumf %141, %144 : vector<8x256xf32>
    %146 = math.exp %145 : vector<8x256xf32>
    %cst_57 = arith.constant 1.000000e+00 : f32
    %147 = vector.broadcast %cst_57 : f32 to vector<8x256xf32>
    %148 = arith.subf %146, %147 : vector<8x256xf32>
    %149 = arith.select %143, %141, %148 : vector<8x256xi1>, vector<8x256xf32>
    %c0_58 = arith.constant 0 : index
    %c0_59 = arith.constant 0 : index
    %150 = vector.load %arg12[%c0_58, %c0_59] : memref<8x256xf32, #tpu.memory_space<vmem>>, vector<8x256xf32>
    tpu.vector_store %arg12[%c0_58, %c0_59], %149 {strides = array<i32>} : memref<8x256xf32, #tpu.memory_space<vmem>>, vector<8x256xf32>,
    return
  }
}

</mosaic_0001>

<llo_original>
// kernel: decoder_block.1
$region0: #{decoder_block.1}
  #allocation0 [shape = 'u32[]', space=smem, size = 0x4, offset = 0x4, fixed_abs, tag = 'smem constant byte address 0x4 - core index']
  #allocation1 [shape = 'u32[144,128]{1,0:T(1,128)}', space=vmem, size = 0x12000, scoped, tag = 'internal scratch']
  %s0 = inlined_call_operand.vmem [shape: bf16[16,256], index: 0, kind: input, shape index: {}]
  %s1 = inlined_call_operand.vmem [shape: f32[8,256], index: 1, kind: input, shape index: {}]
  %s2 = inlined_call_operand.vmem [shape: bf16[16,16], index: 2, kind: input, shape index: {}]
  %s3 = inlined_call_operand.vmem [shape: f32[8,1], index: 3, kind: input, shape index: {}]
  %s4 = inlined_call_operand.vmem [shape: bf16[8,48], index: 4, kind: input, shape index: {}]
  %s5 = inlined_call_operand.vmem [shape: f32[8,1], index: 5, kind: input, shape index: {}]
  %s6 = inlined_call_operand.vmem [shape: f32[8,1], index: 6, kind: input, shape index: {}]
  %s7 = inlined_call_operand.vmem [shape: f32[8,1], index: 7, kind: input, shape index: {}]
  %s8 = inlined_call_operand.vmem [shape: bf16[8,24], index: 8, kind: input, shape index: {}]
  %s9 = inlined_call_operand.vmem [shape: f32[8,1], index: 9, kind: input, shape index: {}]
  %s10 = inlined_call_operand.vmem [shape: f32[8,1], index: 10, kind: input, shape index: {}]
  %s11 = inlined_call_operand.vmem [shape: f32[8,1], index: 11, kind: input, shape index: {}]
  %s12 = inlined_call_operand.hbm [shape: f32[8,256], index: 12, kind: output, shape index: {}]
  %s13 = sld [smem:[#allocation0]]
  $region58: #{decoder_block.1} parent=0
    _
  %s15 = ssub.s32 1, %s13
  %s16 = scalar_select 0, %s15, %s13
  $region1: #{decoder_block.1} parent=0
    #allocation2 [shape = 'u8[8192]{0}', space=vmem, size = 0x2000, scoped, tag = 'output window, operand 0, single buffered']
    #allocation3 [shape = 's32[1]{0}', space=sflag, size = 0x4, scoped, tag = 'scoped memory for decoder_block.1']
    %17 = vsyncpa [#allocation3], 0
    // Predicated region
    $region2: #{decoder_block.1} parent=1 // pred_check
      _
    $region3: #{decoder_block.1} parent=1 // pred_check_branch
      %19 = sbr.rel (0) target = $region5
    $region4: #{decoder_block.1} parent=1 // pred_region
      _
    $region5: #{decoder_block.1} parent=1 // pred_fallthru
      _
    // Predicated region
    $region6: #{decoder_block.1} parent=1 // pred_check
      _
    $region7: #{decoder_block.1} parent=1 // pred_check_branch
      %21 = sbr.rel (0) target = $region9
    $region8: #{decoder_block.1} parent=1 // pred_region
      _
    $region9: #{decoder_block.1} parent=1 // pred_fallthru
      _
    // Predicated region
    $region10: #{decoder_block.1} parent=1 // pred_check
      _
    $region11: #{decoder_block.1} parent=1 // pred_check_branch
      %23 = sbr.rel (0) target = $region13
    $region12: #{decoder_block.1} parent=1 // pred_region
      _
    $region13: #{decoder_block.1} parent=1 // pred_fallthru
      _
    // Predicated region
    $region14: #{decoder_block.1} parent=1 // pred_check
      _
    $region15: #{decoder_block.1} parent=1 // pred_check_branch
      %25 = sbr.rel (0) target = $region17
    $region16: #{decoder_block.1} parent=1 // pred_region
      _
    $region17: #{decoder_block.1} parent=1 // pred_fallthru
      _
    // Predicated region
    $region18: #{decoder_block.1} parent=1 // pred_check
      _
    $region19: #{decoder_block.1} parent=1 // pred_check_branch
      %27 = sbr.rel (0) target = $region21
    $region20: #{decoder_block.1} parent=1 // pred_region
      _
    $region21: #{decoder_block.1} parent=1 // pred_fallthru
      _
    // Predicated region
    $region22: #{decoder_block.1} parent=1 // pred_check
      _
    $region23: #{decoder_block.1} parent=1 // pred_check_branch
      %29 = sbr.rel (0) target = $region25
    $region24: #{decoder_block.1} parent=1 // pred_region
      _
    $region25: #{decoder_block.1} parent=1 // pred_fallthru
      _
    // Predicated region
    $region26: #{decoder_block.1} parent=1 // pred_check
      _
    $region27: #{decoder_block.1} parent=1 // pred_check_branch
      %31 = sbr.rel (0) target = $region29
    $region28: #{decoder_block.1} parent=1 // pred_region
      _
    $region29: #{decoder_block.1} parent=1 // pred_fallthru
      _
    // Predicated region
    $region30: #{decoder_block.1} parent=1 // pred_check
      _
    $region31: #{decoder_block.1} parent=1 // pred_check_branch
      %33 = sbr.rel (0) target = $region33
    $region32: #{decoder_block.1} parent=1 // pred_region
      _
    $region33: #{decoder_block.1} parent=1 // pred_fallthru
      _
    // Predicated region
    $region34: #{decoder_block.1} parent=1 // pred_check
      _
    $region35: #{decoder_block.1} parent=1 // pred_check_branch
      %35 = sbr.rel (0) target = $region37
    $region36: #{decoder_block.1} parent=1 // pred_region
      _
    $region37: #{decoder_block.1} parent=1 // pred_fallthru
      _
    // Predicated region
    $region38: #{decoder_block.1} parent=1 // pred_check
      _
    $region39: #{decoder_block.1} parent=1 // pred_check_branch
      %37 = sbr.rel (0) target = $region41
    $region40: #{decoder_block.1} parent=1 // pred_region
      _
    $region41: #{decoder_block.1} parent=1 // pred_fallthru
      _
    // Predicated region
    $region42: #{decoder_block.1} parent=1 // pred_check
      _
    $region43: #{decoder_block.1} parent=1 // pred_check_branch
      %39 = sbr.rel (0) target = $region45
    $region44: #{decoder_block.1} parent=1 // pred_region
      _
    $region45: #{decoder_block.1} parent=1 // pred_fallthru
      _
    // Predicated region
    $region46: #{decoder_block.1} parent=1 // pred_check
      _
    $region47: #{decoder_block.1} parent=1 // pred_check_branch
      %41 = sbr.rel (0) target = $region49
    $region48: #{decoder_block.1} parent=1 // pred_region
      _
    $region49: #{decoder_block.1} parent=1 // pred_fallthru
      _
    %v43 = vlaneseq
    %v44 = vand.u32 %v43, 127
    %v45 = vadd.s32 %v44, 128
    %vm46 = vcmp.lt.s32.totalorder %v44, 0
    %v47 = vsub.s32 0, %v44
    %v48 = vsel %vm46, %v47, %v44
    %v49 = vshrl.u32 %v48, 7
    %v50 = vand.u32 %v48, 127
    %v51 = vsub.s32 0, %v50
    %v52 = vsel %vm46, %v51, %v50
    %vm53 = vcmp.lt.s32.totalorder %v45, 0
    %v54 = vsub.s32 0, %v45
    %v55 = vsel %vm53, %v54, %v45
    %v56 = vshrl.u32 %v55, 7
    %v57 = vand.u32 %v55, 127
    %v58 = vsub.s32 0, %v57
    %v59 = vsel %vm53, %v58, %v57
    %vm60 = vcmp.ne.s32.totalorder %v52, 0
    %vm61 = vcmp.ne.s32.totalorder %v59, 0
    %vm62 = vcmp.lt.s32.totalorder %v52, 0
    %vm63 = vcmp.lt.s32.totalorder %v59, 0
    %vm64 = vmand %vm62, %vm60
    %vm65 = vmand %vm63, %vm61
    %v66 = vadd.s32 %v52, 128
    %v67 = vadd.s32 %v59, 128
    %v68 = vsel %vm64, %v66, %v52
    %v69 = vsel %vm65, %v67, %v59
    %vm70 = vcmp.eq.s32.totalorder %v68, 0
    %vm71 = vcmp.eq.s32.totalorder %v69, 0
    %vm72 = vcmp.eq.s32.totalorder %v68, 127
    %vm73 = vcmp.eq.s32.totalorder %v69, 127
    %vm74 = vcmp.lt.s32.totalorder %v44, 0
    %v75 = vsub.s32 0, %v44
    %v76 = vsel %vm74, %v75, %v44
    %v77 = vshrl.u32 %v76, 1
    %v78 = vand.u32 %v76, 1
    %v79 = vsub.s32 0, %v78
    %v80 = vsel %vm74, %v79, %v78
    %vm81 = vcmp.lt.s32.totalorder %v45, 0
    %v82 = vsub.s32 0, %v45
    %v83 = vsel %vm81, %v82, %v45
    %v84 = vshrl.u32 %v83, 1
    %v85 = vand.u32 %v83, 1
    %v86 = vsub.s32 0, %v85
    %v87 = vsel %vm81, %v86, %v85
    %vm88 = vcmp.ne.s32.totalorder %v80, 0
    %vm89 = vcmp.ne.s32.totalorder %v87, 0
    %vm90 = vcmp.lt.s32.totalorder %v80, 0
    %vm91 = vcmp.lt.s32.totalorder %v87, 0
    %vm92 = vmand %vm90, %vm88
    %vm93 = vmand %vm91, %vm89
    %v94 = vadd.s32 %v80, 2
    %v95 = vadd.s32 %v87, 2
    %v96 = vsel %vm92, %v94, %v80
    %v97 = vsel %vm93, %v95, %v87
    %vm98 = vcmp.eq.s32.totalorder %v96, 1
    %vm99 = vcmp.eq.s32.totalorder %v97, 1
    %v100 = vld [vmem:[%s2] sm:$0xf]
    %v101 = vld [vmem:[%s2 + $0x4] sm:$0xf]
    %v102 = vld [vmem:[%s0] sm:$0xff]
    %v103 = vld [vmem:[%s0 + $0x8] sm:$0xff]
    %v106 = vunpack.c.l.b16 %v100
    %v107 = vunpack.c.l.b16 %v101
    %v108 = vpack.c.b16 %v107, %v106
    %v111 = vunpack.c.l.b16 %v102
    %v112 = vunpack.c.h.b16 %v102
    %v113 = vunpack.c.l.b16 %v103
    %v114 = vunpack.c.h.b16 %v103
    %v115 = vpack.c.b16 %v113, %v111
    %v116 = vpack.c.b16 %v114, %v112
    %vm119 = vcmask 130048
    %v121 = vsel %vm119, %v108, 0
    %123 = vmatprep.subr.bf16.mxu0 %v116
    %124 = vmatpush1.bf16.msra.mxu0 %v115
    %125 = vmatprep.subr.bf16.mxu0 0
    %126 = vmatpush1.bf16.msra.mxu0 0
    %127 = vmatprep.subr.bf16.mxu0 0
    %128 = vmatpush1.bf16.msra.mxu0 0
    %129 = vmatprep.subr.bf16.mxu0 0
    %130 = vmatpush1.bf16.msra.mxu0 0
    %131 = vmatprep.subr.bf16.mxu0 0
    %132 = vmatpush1.bf16.msra.mxu0 0
    %133 = vmatprep.subr.bf16.mxu0 0
    %134 = vmatpush1.bf16.msra.mxu0 0
    %135 = vmatprep.subr.bf16.mxu0 0
    %136 = vmatpush1.bf16.msra.mxu0 0
    %137 = vmatprep.subr.bf16.mxu0 0
    %138 = vmatpush1.bf16.msra.mxu0 0
    %139 = vmatprep.subr.bf16.mxu0 0
    %140 = vmatpush1.bf16.msra.mxu0 0
    %141 = vmatprep.subr.bf16.mxu0 0
    %142 = vmatpush1.bf16.msra.mxu0 0
    %143 = vmatprep.subr.bf16.mxu0 0
    %144 = vmatpush1.bf16.msra.mxu0 0
    %145 = vmatprep.subr.bf16.mxu0 0
    %146 = vmatpush1.bf16.msra.mxu0 0
    %147 = vmatprep.subr.bf16.mxu0 0
    %148 = vmatpush1.bf16.msra.mxu0 0
    %149 = vmatprep.subr.bf16.mxu0 0
    %150 = vmatpush1.bf16.msra.mxu0 0
    %151 = vmatprep.subr.bf16.mxu0 0
    %152 = vmatpush1.bf16.msra.mxu0 0
    %153 = vmatprep.subr.bf16.mxu0 0
    %154 = vmatpush1.bf16.msra.mxu0 0
    %155 = vmatprep.mubr.bf16.mxu0 0
    %156 = vmatmul.mubr.bf16.gmra.mrb[0].mxu0 %v121
    %v157 = vpop.f32.mrb[0].mxu0
    %v158 = vadd.f32 0.0, %v157
    %v159 = vpop.f32.mrb[0].mxu0
    %v160 = vadd.f32 0.0, %v159
    %v161 = vpop.f32.mrb[0].mxu0
    %v162 = vadd.f32 0.0, %v161
    %v163 = vpop.f32.mrb[0].mxu0
    %v164 = vadd.f32 0.0, %v163
    %165 = vdwg.mxu0
    %v166 = vsel %vm98, 1, 0
    %v167 = vsel %vm99, 1, 0
    %vm168 = vcmp.eq.s32.totalorder %v166, 1
    %vm169 = vcmp.eq.s32.totalorder %v167, 1
    %v170 = vsel %vm168, %v162, %v158
    %v171 = vsel %vm169, %v164, %v160
    %v172 = vld [vmem:[%s3] sm:$0xff]
    %174 = vset.pattern.permute.xlu0 0
    %175 = vperm.xlu0 %174, %v172
    %v176 = vpop.permute.xlu0 %175
    %v178 = vadd.f32 %v170, %v176
    %v179 = vadd.f32 %v171, %v176
    %v180 = vld [vmem:[%s1] sm:$0xff]
    %v181 = vld [vmem:[%s1 + $0x8] sm:$0xff]
    %v182 = vld [vmem:[%s5] sm:$0xff]
    %183 = vrot.lane.b32.xlu0 %v178, 1
    %v184 = vpop.permute.xlu0 %183
    %185 = vrot.lane.b32.xlu0 %v180, 1
    %v186 = vpop.permute.xlu0 %185
    %187 = vrot.lane.b32.xlu0 %v179, 1
    %v188 = vpop.permute.xlu0 %187
    %189 = vrot.lane.b32.xlu0 %v181, 1
    %v190 = vpop.permute.xlu0 %189
    %vm191 = vcmp.lt.s32.totalorder %v44, 1
    %v192 = vsel %vm191, %v184, %v188
    %v193 = vsel %vm191, %v186, %v190
    %v194 = vsel %vm191, %v188, %v184
    %v195 = vsel %vm191, %v190, %v186
    %v196 = vsel %vm70, 1, 0
    %v197 = vsel %vm71, 1, 0
    %vm198 = vcmp.eq.s32.totalorder %v196, 1
    %vm199 = vcmp.eq.s32.totalorder %v197, 1
    %v200 = vsel %vm198, 0.0, %v194
    %v201 = vsel %vm199, 0.0, %v192
    %v202 = vsel %vm198, 0.0, %v195
    %v203 = vsel %vm199, 0.0, %v193
    %204 = vrot.lane.b32.xlu0 %v178, 127
    %v205 = vpop.permute.xlu0 %204
    %206 = vrot.lane.b32.xlu0 %v180, 127
    %v207 = vpop.permute.xlu0 %206
    %208 = vrot.lane.b32.xlu0 %v179, 127
    %v209 = vpop.permute.xlu0 %208
    %210 = vrot.lane.b32.xlu0 %v181, 127
    %v211 = vpop.permute.xlu0 %210
    %vm212 = vcmp.lt.s32.totalorder %v44, 127
    %v213 = vsel %vm212, %v205, %v209
    %v214 = vsel %vm212, %v207, %v211
    %v215 = vsel %vm212, %v209, %v205
    %v216 = vsel %vm212, %v211, %v207
    %v217 = vsel %vm72, 1, 0
    %v218 = vsel %vm73, 1, 0
    %vm219 = vcmp.eq.s32.totalorder %v217, 1
    %vm220 = vcmp.eq.s32.totalorder %v218, 1
    %v221 = vsel %vm219, 0.0, %v213
    %v222 = vsel %vm220, 0.0, %v215
    %v223 = vsel %vm219, 0.0, %v214
    %v224 = vsel %vm220, 0.0, %v216
    %v225 = vld [vmem:[%s4] sm:$0xf]
    %v226 = vpack.c.bf16 %v202, %v200
    %v227 = vpack.c.bf16 %v203, %v201
    %v228 = vpack.c.bf16 %v180, %v178
    %v229 = vpack.c.bf16 %v181, %v179
    %v230 = vpack.c.bf16 %v223, %v221
    %v231 = vpack.c.bf16 %v224, %v222
    %233 = vset.pattern.permute.xlu0 0
    %234 = vperm.xlu0 %233, %v182
    %v235 = vpop.permute.xlu0 %234
    %vm237 = vcmask 392192
    %v239 = vsel %vm237, %v225, 0
    %241 = vmatprep.subr.bf16.mxu0 %v227
    %242 = vmatpush1.bf16.msra.mxu0 %v226
    %243 = vmatprep.subr.bf16.mxu0 %v229
    %244 = vmatpush1.bf16.msra.mxu0 %v228
    %245 = vmatprep.subr.bf16.mxu0 %v231
    %246 = vmatpush1.bf16.msra.mxu0 %v230
    %247 = vmatprep.subr.bf16.mxu0 0
    %248 = vmatpush1.bf16.msra.mxu0 0
    %249 = vmatprep.subr.bf16.mxu0 0
    %250 = vmatpush1.bf16.msra.mxu0 0
    %251 = vmatprep.subr.bf16.mxu0 0
    %252 = vmatpush1.bf16.msra.mxu0 0
    %253 = vmatprep.subr.bf16.mxu0 0
    %254 = vmatpush1.bf16.msra.mxu0 0
    %255 = vmatprep.subr.bf16.mxu0 0
    %256 = vmatpush1.bf16.msra.mxu0 0
    %257 = vmatprep.subr.bf16.mxu0 0
    %258 = vmatpush1.bf16.msra.mxu0 0
    %259 = vmatprep.subr.bf16.mxu0 0
    %260 = vmatpush1.bf16.msra.mxu0 0
    %261 = vmatprep.subr.bf16.mxu0 0
    %262 = vmatpush1.bf16.msra.mxu0 0
    %263 = vmatprep.subr.bf16.mxu0 0
    %264 = vmatpush1.bf16.msra.mxu0 0
    %265 = vmatprep.subr.bf16.mxu0 0
    %266 = vmatpush1.bf16.msra.mxu0 0
    %267 = vmatprep.subr.bf16.mxu0 0
    %268 = vmatpush1.bf16.msra.mxu0 0
    %269 = vmatprep.subr.bf16.mxu0 0
    %270 = vmatpush1.bf16.msra.mxu0 0
    %271 = vmatprep.subr.bf16.mxu0 0
    %272 = vmatpush1.bf16.msra.mxu0 0
    %273 = vmatprep.mubr.bf16.mxu0 0
    %274 = vmatmul.mubr.bf16.gmra.mrb[0].mxu0 %v239
    %v275 = vpop.f32.mrb[0].mxu0
    %v276 = vadd.f32 %v235, %v275
    %v277 = vpop.f32.mrb[0].mxu0
    %v278 = vadd.f32 %v235, %v277
    %v279 = vpop.f32.mrb[0].mxu0
    %v280 = vpop.f32.mrb[0].mxu0
    %281 = vdwg.mxu0
    %v282 = vld [vmem:[%s6] sm:$0xff]
    %v283 = vld [vmem:[%s7] sm:$0xff]
    %v284 = vadd.f32 %v276, %v278
    %285 = vadd.xlane.f32.xlu0 %v284
    %v286 = vpop.xlane.xlu0 %285
    %v287 = vrcp.pop 256.0
    %v288 = vmul.f32 %v286, %v287
    %v289 = vsub.f32 %v276, %v288
    %v290 = vsub.f32 %v278, %v288
    %v291 = vmul.f32 %v289, %v289
    %v292 = vmul.f32 %v290, %v290
    %v293 = vadd.f32 %v291, %v292
    %294 = vadd.xlane.f32.xlu0 %v293
    %v295 = vpop.xlane.xlu0 %294
    %v296 = vmul.f32 %v295, %v287
    %v297 = vadd.f32 %v296, 1e-05
    %v298 = vrsqrt.pop %v297
    %v299 = vmul.f32 %v289, %v298
    %v300 = vmul.f32 %v290, %v298
    %302 = vset.pattern.permute.xlu0 0
    %303 = vperm.xlu0 %302, %v282
    %v304 = vpop.permute.xlu0 %303
    %v306 = vmul.f32 %v299, %v304
    %v307 = vmul.f32 %v300, %v304
    %309 = vset.pattern.permute.xlu0 0
    %310 = vperm.xlu0 %309, %v283
    %v311 = vpop.permute.xlu0 %310
    %v313 = vadd.f32 %v306, %v311
    %v314 = vadd.f32 %v307, %v311
    %vm315 = vcmp.gt.f32.partialorder %v313, 0.0
    %vm316 = vcmp.gt.f32.partialorder %v314, 0.0
    %v317 = vmin.f32 %v313, 0.0
    %v318 = vmin.f32 %v314, 0.0
    %v319 = vmul.f32 %v317, 1.442695
    %v320 = vpow.pop %v319
    %v321 = vmul.f32 %v318, 1.442695
    %v322 = vpow.pop %v321
    %v323 = vsub.f32 %v320, 1.0
    %v324 = vsub.f32 %v322, 1.0
    %v325 = vsel %vm315, %v313, %v323
    %v326 = vsel %vm316, %v314, %v324
    %v327 = vld [vmem:[%s9] sm:$0xff]
    %328 = vrot.lane.b32.xlu0 %v325, 1
    %v329 = vpop.permute.xlu0 %328
    %330 = vrot.lane.b32.xlu0 %v326, 1
    %v331 = vpop.permute.xlu0 %330
    %v332 = vsel %vm191, %v329, %v331
    %v333 = vsel %vm191, %v331, %v329
    %v334 = vsel %vm198, 0.0, %v333
    %v335 = vsel %vm199, 0.0, %v332
    %336 = vrot.lane.b32.xlu0 %v325, 127
    %v337 = vpop.permute.xlu0 %336
    %338 = vrot.lane.b32.xlu0 %v326, 127
    %v339 = vpop.permute.xlu0 %338
    %v340 = vsel %vm212, %v337, %v339
    %v341 = vsel %vm212, %v339, %v337
    %v342 = vsel %vm219, 0.0, %v340
    %v343 = vsel %vm220, 0.0, %v341
    %v344 = vld [vmem:[%s8] sm:$0xf]
    %v345 = vpack.c.bf16 %v325, %v334
    %v346 = vpack.c.bf16 %v326, %v335
    %v347 = vpack.c.bf16 %v342, %v342
    %v348 = vpack.c.bf16 %v343, %v343
    %350 = vset.pattern.permute.xlu0 0
    %351 = vperm.xlu0 %350, %v327
    %v352 = vpop.permute.xlu0 %351
    %vm354 = vcmask 195584
    %v356 = vsel %vm354, %v344, 0
    %vm358 = vcmask 1043456
    %v360 = vsel %vm358, %v347, 0
    %v363 = vsel %vm358, %v348, 0
    %365 = vmatprep.subr.bf16.mxu0 %v346
    %366 = vmatpush1.bf16.msra.mxu0 %v345
    %367 = vmatprep.subr.bf16.mxu0 %v363
    %368 = vmatpush1.bf16.msra.mxu0 %v360
    %369 = vmatprep.subr.bf16.mxu0 0
    %370 = vmatpush1.bf16.msra.mxu0 0
    %371 = vmatprep.subr.bf16.mxu0 0
    %372 = vmatpush1.bf16.msra.mxu0 0
    %373 = vmatprep.subr.bf16.mxu0 0
    %374 = vmatpush1.bf16.msra.mxu0 0
    %375 = vmatprep.subr.bf16.mxu0 0
    %376 = vmatpush1.bf16.msra.mxu0 0
    %377 = vmatprep.subr.bf16.mxu0 0
    %378 = vmatpush1.bf16.msra.mxu0 0
    %379 = vmatprep.subr.bf16.mxu0 0
    %380 = vmatpush1.bf16.msra.mxu0 0
    %381 = vmatprep.subr.bf16.mxu0 0
    %382 = vmatpush1.bf16.msra.mxu0 0
    %383 = vmatprep.subr.bf16.mxu0 0
    %384 = vmatpush1.bf16.msra.mxu0 0
    %385 = vmatprep.subr.bf16.mxu0 0
    %386 = vmatpush1.bf16.msra.mxu0 0
    %387 = vmatprep.subr.bf16.mxu0 0
    %388 = vmatpush1.bf16.msra.mxu0 0
    %389 = vmatprep.subr.bf16.mxu0 0
    %390 = vmatpush1.bf16.msra.mxu0 0
    %391 = vmatprep.subr.bf16.mxu0 0
    %392 = vmatpush1.bf16.msra.mxu0 0
    %393 = vmatprep.subr.bf16.mxu0 0
    %394 = vmatpush1.bf16.msra.mxu0 0
    %395 = vmatprep.subr.bf16.mxu0 0
    %396 = vmatpush1.bf16.msra.mxu0 0
    %397 = vmatprep.mubr.bf16.mxu0 0
    %398 = vmatmul.mubr.bf16.gmra.mrb[0].mxu0 %v356
    %v399 = vpop.f32.mrb[0].mxu0
    %v400 = vadd.f32 %v352, %v399
    %v401 = vpop.f32.mrb[0].mxu0
    %v402 = vadd.f32 %v352, %v401
    %v403 = vpop.f32.mrb[0].mxu0
    %v404 = vpop.f32.mrb[0].mxu0
    %405 = vdwg.mxu0
    %v406 = vld [vmem:[%s10] sm:$0xff]
    %v407 = vld [vmem:[%s11] sm:$0xff]
    %v408 = vadd.f32 %v400, %v402
    %409 = vadd.xlane.f32.xlu0 %v408
    %v410 = vpop.xlane.xlu0 %409
    %v411 = vmul.f32 %v410, %v287
    %v412 = vsub.f32 %v400, %v411
    %v413 = vsub.f32 %v402, %v411
    %v414 = vmul.f32 %v412, %v412
    %v415 = vmul.f32 %v413, %v413
    %v416 = vadd.f32 %v414, %v415
    %417 = vadd.xlane.f32.xlu0 %v416
    %v418 = vpop.xlane.xlu0 %417
    %v419 = vmul.f32 %v418, %v287
    %v420 = vadd.f32 %v419, 1e-05
    %v421 = vrsqrt.pop %v420
    %v422 = vmul.f32 %v412, %v421
    %v423 = vmul.f32 %v413, %v421
    %425 = vset.pattern.permute.xlu0 0
    %426 = vperm.xlu0 %425, %v406
    %v427 = vpop.permute.xlu0 %426
    %v429 = vmul.f32 %v422, %v427
    %v430 = vmul.f32 %v423, %v427
    %432 = vset.pattern.permute.xlu0 0
    %433 = vperm.xlu0 %432, %v407
    %v434 = vpop.permute.xlu0 %433
    %v436 = vadd.f32 %v429, %v434
    %v437 = vadd.f32 %v430, %v434
    %vm438 = vcmp.gt.f32.partialorder %v436, 0.0
    %vm439 = vcmp.gt.f32.partialorder %v437, 0.0
    %v440 = vmin.f32 %v436, 0.0
    %v441 = vmin.f32 %v437, 0.0
    %v442 = vmul.f32 %v440, 1.442695
    %v443 = vpow.pop %v442
    %v444 = vmul.f32 %v441, 1.442695
    %v445 = vpow.pop %v444
    %v446 = vsub.f32 %v443, 1.0
    %v447 = vsub.f32 %v445, 1.0
    %v448 = vsel %vm438, %v436, %v446
    %v449 = vsel %vm439, %v437, %v447
    %450 = vst [vmem:[#allocation2] sm:$0xff] %v448
    %451 = vst [vmem:[#allocation2 + $0x8] sm:$0xff] %v449
    // Predicated region
    $region50: #{decoder_block.1} parent=1 // pred_check
      _
    $region51: #{decoder_block.1} parent=1 // pred_check_branch
      %453 = sbr.rel (0) target = $region53
    $region52: #{decoder_block.1} parent=1 // pred_region
      %s455 = ssub.s32 256, 256
      %456 = vsyncadd [#allocation3], %s455
      %s458 = sshll.u32 [#allocation2], 4
      %s459 = int_to_ptr.vmem [resolvable:$true] %s458
      %461 = dma.vmem_to_hbm [thread:$0]  %s459, 256, %s12, [#allocation3]
    $region53: #{decoder_block.1} parent=1 // pred_fallthru
      _
    // Predicated region
    $region54: #{decoder_block.1} parent=1 // pred_check
      _
    $region55: #{decoder_block.1} parent=1 // pred_check_branch
      %463 = sbr.rel (0) target = $region57
    $region56: #{decoder_block.1} parent=1 // pred_region
      %464 = dma.done [#allocation3], 256
    $region57: #{decoder_block.1} parent=1 // pred_fallthru
      _
    %465 = vsyncpa [#allocation3], 1

</llo_original>
